<compile_context>
chip_gen: v5e
topology: v5e:2x2
jax: 0.10.0
libtpu: 0.0.40
codegen_flags: <defaults>
</compile_context>

<pallas_src>
import functools

import jax
import jax.numpy as jnp
from jax.experimental import pallas as pl
from jax.experimental.pallas import tpu as pltpu  # noqa: F401  (used for scaling path)


def _fused_head_kernel(x_ref, w1_ref, w2_ref, w3_ref, bias_ref, out_ref, *, n_classes):
    """One fused kernel: 3 matmuls (all horizons at once) + per-horizon softmax."""
    h1t = w1_ref.shape[1]          # Nh * hidden
    h2t = w2_ref.shape[1]          # Nh * hidden//2
    nct = w3_ref.shape[1]          # Nh * n_classes
    n_groups = nct // n_classes

    x = x_ref[...]                                                   # [B, D]
    bias = bias_ref[...]                                             # [3, width]
    b1 = bias[0:1, :h1t]
    b2 = bias[1:2, :h2t]
    b3 = bias[2:3, :nct]

    # Linear 1 + ReLU (Dropout -> identity at inference)
    h1 = jnp.dot(x, w1_ref[...], preferred_element_type=jnp.float32) + b1
    h1 = jnp.maximum(h1, 0.0)                                        # [B, Nh*H1]
    # Linear 2 (block-diagonal) + ReLU
    h2 = jnp.dot(h1, w2_ref[...], preferred_element_type=jnp.float32) + b2
    h2 = jnp.maximum(h2, 0.0)                                        # [B, Nh*H2]
    # Linear 3 (block-diagonal) -> all horizons' logits, lane-concatenated
    logits = jnp.dot(h2, w3_ref[...], preferred_element_type=jnp.float32) + b3  # [B, NCT]

    # In-kernel group mask (no DMA'd operand, no integer division): lane j belongs
    # to group sum_g [j >= g*C].
    row = jax.lax.broadcasted_iota(jnp.int32, (nct, nct), 0)
    col = jax.lax.broadcasted_iota(jnp.int32, (nct, nct), 1)
    row_gid = jnp.zeros((nct, nct), jnp.int32)
    col_gid = jnp.zeros((nct, nct), jnp.int32)
    for g in range(1, n_groups):
        b = g * n_classes
        row_gid = row_gid + (row >= b).astype(jnp.int32)
        col_gid = col_gid + (col >= b).astype(jnp.int32)
    same_group = row_gid == col_gid                                  # [NCT, NCT] bool

    # Numerically robust per-horizon softmax: per-GROUP max via masked max.
    neg_big = jnp.float32(-1e30)
    masked = jnp.where(same_group[None, :, :], logits[:, None, :], neg_big)  # [B,NCT,NCT]
    gmax = jnp.max(masked, axis=-1)                                  # [B, NCT] (group max per lane)
    e3 = jnp.exp(masked - gmax[:, :, None])                          # fill -> exp(-huge) = 0
    gsum = jnp.sum(e3, axis=-1)                                      # [B, NCT] (group denom per lane)
    probs = jnp.exp(logits - gmax) / gsum                            # exact division

    # Single lane-packed store: [logits || probs].
    out_ref[...] = jnp.concatenate([logits, probs], axis=-1)         # [B, 2*NCT]


def _run_fused_heads(features, fused, n_classes):
    B, D = features.shape
    H1T = fused["w1"].shape[1]
    H2T = fused["w2"].shape[1]
    NCT = fused["w3"].shape[1]
    bias_shape = fused["bias"].shape

    full = lambda shape: pl.BlockSpec(shape, lambda: (0,) * len(shape))
    kernel = functools.partial(_fused_head_kernel, n_classes=n_classes)

    return pl.pallas_call(
        kernel,
        out_shape=jax.ShapeDtypeStruct((B, 2 * NCT), jnp.float32),
        grid=(),
        in_specs=[
            full((B, D)),
            full((D, H1T)),
            full((H1T, H2T)),
            full((H2T, NCT)),
            full(bias_shape),
        ],
        out_specs=full((B, 2 * NCT)),
    )(features, fused["w1"], fused["w2"], fused["w3"], fused["bias"])


def init_direction_head_params(key, horizons, d_model, hidden_dim, n_classes=3):
    """Deterministic synthetic parameters (one MLP per horizon), PyTorch-equivalent."""
    params = {}
    for h in horizons:
        key, k1, k2, k3, k4, k5, k6 = jax.random.split(key, 7)
        params[f"horizon_{h}"] = {
            "w1": jax.random.normal(k1, (d_model, hidden_dim), jnp.float32) * 0.05,
            "b1": jax.random.normal(k2, (1, hidden_dim), jnp.float32) * 0.01,
            "w2": jax.random.normal(k3, (hidden_dim, hidden_dim // 2), jnp.float32) * 0.05,
            "b2": jax.random.normal(k4, (1, hidden_dim // 2), jnp.float32) * 0.01,
            "w3": jax.random.normal(k5, (hidden_dim // 2, n_classes), jnp.float32) * 0.05,
            "b3": jax.random.normal(k6, (1, n_classes), jnp.float32) * 0.01,
        }
    return params


def fuse_direction_head_params(params, horizons, n_classes=3):
    """Lane-concatenate layer 1; layers 2/3 block-diagonal; biases packed into one buffer."""
    ps = [params[f"horizon_{h}"] for h in horizons]
    w1 = jnp.concatenate([p["w1"] for p in ps], axis=1)            # [D, Nh*H1]
    w2 = jax.scipy.linalg.block_diag(*[p["w2"] for p in ps])       # [Nh*H1, Nh*H2]
    w3 = jax.scipy.linalg.block_diag(*[p["w3"] for p in ps])       # [Nh*H2, Nh*C]
    b1 = jnp.concatenate([p["b1"] for p in ps], axis=1)[0]         # [Nh*H1]
    b2 = jnp.concatenate([p["b2"] for p in ps], axis=1)[0]         # [Nh*H2]
    b3 = jnp.concatenate([p["b3"] for p in ps], axis=1)[0]         # [Nh*C]
    width = max(b1.shape[0], b2.shape[0], b3.shape[0])
    bias = jnp.zeros((3, width), jnp.float32)
    bias = bias.at[0, : b1.shape[0]].set(b1)
    bias = bias.at[1, : b2.shape[0]].set(b2)
    bias = bias.at[2, : b3.shape[0]].set(b3)
    return {"w1": w1, "w2": w2, "w3": w3, "bias": bias}


@functools.partial(jax.jit, static_argnames=("n_classes",))
def direction_head_forward_packed(features, fused, n_classes=3):
    """Hot path: one kernel launch, packed [B, Nh, C] logits/probabilities."""
    packed = _run_fused_heads(features, fused, n_classes)
    B = features.shape[0]
    NCT = fused["w3"].shape[1]
    nh = NCT // n_classes
    logits = packed[:, :NCT].reshape(B, nh, n_classes)
    probs = packed[:, NCT:].reshape(B, nh, n_classes)
    return logits, probs


def direction_classification_head_forward(features, fused, horizons, n_classes=3):
    """PyTorch-equivalent API: dict of {logits, probabilities} per horizon.

    Thin consumer-side view over the packed forward (per review: let consumers index).
    """
    logits, probs = direction_head_forward_packed(features, fused, n_classes=n_classes)
    return {
        f"horizon_{h}": {"logits": logits[:, i], "probabilities": probs[:, i]}
        for i, h in enumerate(horizons)
    }


if __name__ == "__main__":
    # Small, module-consistent shapes: batch=8, d_model=32, hidden_dim=32 -> 16 -> 3
    B, D_MODEL, HIDDEN = 8, 32, 32
    HORIZONS = (30, 180, 365, 730)
    N_CLASSES = 3

    key = jax.random.PRNGKey(0)
    kf, kp = jax.random.split(key)
    features = jax.random.normal(kf, (B, D_MODEL), jnp.float32)
    params = init_direction_head_params(kp, HORIZONS, D_MODEL, HIDDEN, N_CLASSES)
    fused = fuse_direction_head_params(params, HORIZONS, N_CLASSES)

    # Hot path: single fused kernel launch.
    logits3, probs3 = direction_head_forward_packed(features, fused, n_classes=N_CLASSES)
    jax.block_until_ready((logits3, probs3))

    # PyTorch-style dict view for the correctness check.
    preds = direction_classification_head_forward(features, fused, HORIZONS, N_CLASSES)

    # Pure-JAX per-horizon reference.
    def ref_mlp(x, p):
        h1 = jnp.maximum(x @ p["w1"] + p["b1"], 0.0)
        h2 = jnp.maximum(h1 @ p["w2"] + p["b2"], 0.0)
        logits = h2 @ p["w3"] + p["b3"]
        return logits, jax.nn.softmax(logits, axis=-1)

    for i, h in enumerate(HORIZONS):
        hk = f"horizon_{h}"
        rl, rp = ref_mlp(features, params[hk])
        assert preds[hk]["logits"].shape == (B, N_CLASSES), hk
        assert jnp.allclose(preds[hk]["logits"], rl, atol=1e-5), hk
        assert jnp.allclose(preds[hk]["probabilities"], rp, atol=1e-4), hk
        assert jnp.allclose(jnp.sum(preds[hk]["probabilities"], axis=-1), 1.0, atol=1e-5), hk

    print("KERNEL_OK")
</pallas_src>

<mosaic_0001>
module attributes {stable_mosaic.version = 11 : i64} {
  func.func @_fused_head_kernel(%arg0: memref<8x32xf32, #tpu.memory_space<vmem>>, %arg1: memref<32x128xf32, #tpu.memory_space<vmem>>, %arg2: memref<128x64xf32, #tpu.memory_space<vmem>>, %arg3: memref<64x12xf32, #tpu.memory_space<vmem>>, %arg4: memref<3x128xf32, #tpu.memory_space<vmem>>, %arg5: memref<8x24xf32, #tpu.memory_space<vmem>>) attributes {dimension_semantics = [], scalar_prefetch = 0 : i64, scratch_operands = 0 : i64, tpu.core_type = #tpu.core_type<tc>} {
    %c0 = arith.constant 0 : index
    %c0_0 = arith.constant 0 : index
    %0 = vector.load %arg0[%c0, %c0_0] : memref<8x32xf32, #tpu.memory_space<vmem>>, vector<8x32xf32>
    %c0_1 = arith.constant 0 : index
    %c0_2 = arith.constant 0 : index
    %1 = vector.load %arg4[%c0_1, %c0_2] : memref<3x128xf32, #tpu.memory_space<vmem>>, vector<3x128xf32>
    %2 = vector.extract_strided_slice %1 {offsets = [0, 0], sizes = [1, 128], strides = [1, 1]} : vector<3x128xf32> to vector<1x128xf32>
    %3 = vector.extract_strided_slice %1 {offsets = [1, 0], sizes = [1, 64], strides = [1, 1]} : vector<3x128xf32> to vector<1x64xf32>
    %4 = vector.extract_strided_slice %1 {offsets = [2, 0], sizes = [1, 12], strides = [1, 1]} : vector<3x128xf32> to vector<1x12xf32>
    %c0_3 = arith.constant 0 : index
    %c0_4 = arith.constant 0 : index
    %5 = vector.load %arg1[%c0_3, %c0_4] : memref<32x128xf32, #tpu.memory_space<vmem>>, vector<32x128xf32>
    %cst = arith.constant dense<0.000000e+00> : vector<8x128xf32>
    %6 = tpu.matmul %0, %5, %cst {dimension_numbers = #tpu.dot_dimension_numbers<[1], [0], [0], [1], [0, 0, 1, 1], [], []>} : vector<8x32xf32>, vector<32x128xf32>, vector<8x128xf32> -> vector<8x128xf32>
    %7 = vector.broadcast %2 : vector<1x128xf32> to vector<8x128xf32>
    %8 = arith.addf %6, %7 : vector<8x128xf32>
    %cst_5 = arith.constant 0.000000e+00 : f32
    %9 = vector.broadcast %cst_5 : f32 to vector<8x128xf32>
    %10 = arith.maximumf %8, %9 : vector<8x128xf32>
    %c0_6 = arith.constant 0 : index
    %c0_7 = arith.constant 0 : index
    %11 = vector.load %arg2[%c0_6, %c0_7] : memref<128x64xf32, #tpu.memory_space<vmem>>, vector<128x64xf32>
    %cst_8 = arith.constant dense<0.000000e+00> : vector<8x64xf32>
    %12 = tpu.matmul %10, %11, %cst_8 {dimension_numbers = #tpu.dot_dimension_numbers<[1], [0], [0], [1], [0, 0, 1, 1], [], []>} : vector<8x128xf32>, vector<128x64xf32>, vector<8x64xf32> -> vector<8x64xf32>
    %13 = vector.broadcast %3 : vector<1x64xf32> to vector<8x64xf32>
    %14 = arith.addf %12, %13 : vector<8x64xf32>
    %cst_9 = arith.constant 0.000000e+00 : f32
    %15 = vector.broadcast %cst_9 : f32 to vector<8x64xf32>
    %16 = arith.maximumf %14, %15 : vector<8x64xf32>
    %c0_10 = arith.constant 0 : index
    %c0_11 = arith.constant 0 : index
    %17 = vector.load %arg3[%c0_10, %c0_11] : memref<64x12xf32, #tpu.memory_space<vmem>>, vector<64x12xf32>
    %cst_12 = arith.constant dense<0.000000e+00> : vector<8x12xf32>
    %18 = tpu.matmul %16, %17, %cst_12 {dimension_numbers = #tpu.dot_dimension_numbers<[1], [0], [0], [1], [0, 0, 1, 1], [], []>} : vector<8x64xf32>, vector<64x12xf32>, vector<8x12xf32> -> vector<8x12xf32>
    %19 = vector.broadcast %4 : vector<1x12xf32> to vector<8x12xf32>
    %20 = arith.addf %18, %19 : vector<8x12xf32>
    %21 = tpu.iota {dimensions = array<i32: 0>} : vector<12x12xi32>
    %22 = tpu.iota {dimensions = array<i32: 1>} : vector<12x12xi32>
    %c0_i32 = arith.constant 0 : i32
    %23 = vector.broadcast %c0_i32 : i32 to vector<12x12xi32>
    %c0_i32_13 = arith.constant 0 : i32
    %24 = vector.broadcast %c0_i32_13 : i32 to vector<12x12xi32>
    %c3_i32 = arith.constant 3 : i32
    %25 = vector.broadcast %c3_i32 : i32 to vector<12x12xi32>
    %26 = arith.cmpi sge, %21, %25 : vector<12x12xi32>
    %27 = arith.extui %26 : vector<12x12xi1> to vector<12x12xi32>
    %28 = arith.addi %23, %27 : vector<12x12xi32>
    %c3_i32_14 = arith.constant 3 : i32
    %29 = vector.broadcast %c3_i32_14 : i32 to vector<12x12xi32>
    %30 = arith.cmpi sge, %22, %29 : vector<12x12xi32>
    %31 = arith.extui %30 : vector<12x12xi1> to vector<12x12xi32>
    %32 = arith.addi %24, %31 : vector<12x12xi32>
    %c6_i32 = arith.constant 6 : i32
    %33 = vector.broadcast %c6_i32 : i32 to vector<12x12xi32>
    %34 = arith.cmpi sge, %21, %33 : vector<12x12xi32>
    %35 = arith.extui %34 : vector<12x12xi1> to vector<12x12xi32>
    %36 = arith.addi %28, %35 : vector<12x12xi32>
    %c6_i32_15 = arith.constant 6 : i32
    %37 = vector.broadcast %c6_i32_15 : i32 to vector<12x12xi32>
    %38 = arith.cmpi sge, %22, %37 : vector<12x12xi32>
    %39 = arith.extui %38 : vector<12x12xi1> to vector<12x12xi32>
    %40 = arith.addi %32, %39 : vector<12x12xi32>
    %c9_i32 = arith.constant 9 : i32
    %41 = vector.broadcast %c9_i32 : i32 to vector<12x12xi32>
    %42 = arith.cmpi sge, %21, %41 : vector<12x12xi32>
    %43 = arith.extui %42 : vector<12x12xi1> to vector<12x12xi32>
    %44 = arith.addi %36, %43 : vector<12x12xi32>
    %c9_i32_16 = arith.constant 9 : i32
    %45 = vector.broadcast %c9_i32_16 : i32 to vector<12x12xi32>
    %46 = arith.cmpi sge, %22, %45 : vector<12x12xi32>
    %47 = arith.extui %46 : vector<12x12xi1> to vector<12x12xi32>
    %48 = arith.addi %40, %47 : vector<12x12xi32>
    %49 = arith.cmpi eq, %44, %48 : vector<12x12xi32>
    %50 = vector.shape_cast %49 : vector<12x12xi1> to vector<1x12x12xi1>
    %51 = vector.shape_cast %20 : vector<8x12xf32> to vector<8x1x12xf32>
    %cst_17 = arith.constant -1.000000e+30 : f32
    %52 = vector.shape_cast %50 : vector<1x12x12xi1> to vector<1x12x12xi1>
    %53 = vector.broadcast %52 : vector<1x12x12xi1> to vector<8x12x12xi1>
    %54 = vector.shape_cast %51 : vector<8x1x12xf32> to vector<8x1x12xf32>
    %55 = vector.broadcast %54 : vector<8x1x12xf32> to vector<8x12x12xf32>
    %56 = vector.broadcast %cst_17 : f32 to vector<8x12x12xf32>
    %57 = arith.select %53, %55, %56 : vector<8x12x12xi1>, vector<8x12x12xf32>
    %cst_18 = arith.constant dense<0xFF800000> : vector<8x12xf32>
    %58 = vector.multi_reduction <maximumf>, %57, %cst_18 [2] : vector<8x12x12xf32> to vector<8x12xf32>
    %59 = vector.shape_cast %58 : vector<8x12xf32> to vector<8x12x1xf32>
    %60 = vector.broadcast %59 : vector<8x12x1xf32> to vector<8x12x12xf32>
    %61 = arith.subf %57, %60 : vector<8x12x12xf32>
    %62 = math.exp %61 : vector<8x12x12xf32>
    %cst_19 = arith.constant dense<0.000000e+00> : vector<8x12xf32>
    %63 = vector.multi_reduction <add>, %62, %cst_19 [2] : vector<8x12x12xf32> to vector<8x12xf32>
    %64 = arith.subf %20, %58 : vector<8x12xf32>
    %65 = math.exp %64 : vector<8x12xf32>
    %66 = arith.divf %65, %63 : vector<8x12xf32>
    %67 = tpu.concatenate %20, %66 in 1 : vector<8x12xf32>, vector<8x12xf32> -> vector<8x24xf32>
    %c0_20 = arith.constant 0 : index
    %c0_21 = arith.constant 0 : index
    %68 = vector.load %arg5[%c0_20, %c0_21] : memref<8x24xf32, #tpu.memory_space<vmem>>, vector<8x24xf32>
    tpu.vector_store %arg5[%c0_20, %c0_21], %67 {strides = array<i32>} : memref<8x24xf32, #tpu.memory_space<vmem>>, vector<8x24xf32>,
    return
  }
}

</mosaic_0001>

<llo_original>
// kernel: direction_head_forward_packed.1
$region0: #{direction_head_forward_packed.1}
  #allocation0 [shape = 'u32[]', space=smem, size = 0x4, offset = 0x4, fixed_abs, tag = 'smem constant byte address 0x4 - core index']
  #allocation1 [shape = 'u32[72,128]{1,0:T(1,128)}', space=vmem, size = 0x9000, scoped, tag = 'internal scratch']
  %s0 = inlined_call_operand.vmem [shape: f32[8,32], index: 0, kind: input, shape index: {}]
  %s1 = inlined_call_operand.vmem [shape: f32[32,128], index: 1, kind: input, shape index: {}]
  %s2 = inlined_call_operand.vmem [shape: f32[128,64], index: 2, kind: input, shape index: {}]
  %s3 = inlined_call_operand.vmem [shape: f32[64,12], index: 3, kind: input, shape index: {}]
  %s4 = inlined_call_operand.vmem [shape: f32[3,128], index: 4, kind: input, shape index: {}]
  %s5 = inlined_call_operand.vmem [shape: f32[8,24], index: 5, kind: output, shape index: {}]
  %s6 = sld [smem:[#allocation0]]
  $region30: #{direction_head_forward_packed.1} parent=0
    _
  %s8 = ssub.s32 1, %s6
  %s9 = scalar_select 0, %s8, %s6
  // Predicated region
  $region2: #{direction_head_forward_packed.1} parent=0 // pred_check
    _
  $region3: #{direction_head_forward_packed.1} parent=0 // pred_check_branch
    %11 = sbr.rel (0) target = $region5
  $region4: #{direction_head_forward_packed.1} parent=0 // pred_region
    _
  $region5: #{direction_head_forward_packed.1} parent=0 // pred_fallthru
    _
  // Predicated region
  $region6: #{direction_head_forward_packed.1} parent=0 // pred_check
    _
  $region7: #{direction_head_forward_packed.1} parent=0 // pred_check_branch
    %13 = sbr.rel (0) target = $region9
  $region8: #{direction_head_forward_packed.1} parent=0 // pred_region
    _
  $region9: #{direction_head_forward_packed.1} parent=0 // pred_fallthru
    _
  // Predicated region
  $region10: #{direction_head_forward_packed.1} parent=0 // pred_check
    _
  $region11: #{direction_head_forward_packed.1} parent=0 // pred_check_branch
    %15 = sbr.rel (0) target = $region13
  $region12: #{direction_head_forward_packed.1} parent=0 // pred_region
    _
  $region13: #{direction_head_forward_packed.1} parent=0 // pred_fallthru
    _
  // Predicated region
  $region14: #{direction_head_forward_packed.1} parent=0 // pred_check
    _
  $region15: #{direction_head_forward_packed.1} parent=0 // pred_check_branch
    %17 = sbr.rel (0) target = $region17
  $region16: #{direction_head_forward_packed.1} parent=0 // pred_region
    _
  $region17: #{direction_head_forward_packed.1} parent=0 // pred_fallthru
    _
  // Predicated region
  $region18: #{direction_head_forward_packed.1} parent=0 // pred_check
    _
  $region19: #{direction_head_forward_packed.1} parent=0 // pred_check_branch
    %19 = sbr.rel (0) target = $region21
  $region20: #{direction_head_forward_packed.1} parent=0 // pred_region
    _
  $region21: #{direction_head_forward_packed.1} parent=0 // pred_fallthru
    _
  %v20 = vld [vmem:[%s0] sm:$0xff]
  %v21 = vld [vmem:[%s4] sm:$0x7]
  %v22 = vld [vmem:[%s1] sm:$0xff]
  %v23 = vld [vmem:[%s1 + $0x8] sm:$0xff]
  %v24 = vld [vmem:[%s1 + $0x10] sm:$0xff]
  %v25 = vld [vmem:[%s1 + $0x18] sm:$0xff]
  %v26 = vperm.slane %v21, 0
  %vm27 = vcmask 261120
  %v29 = vsel %vm27, %v20, 0
  %31 = vmatpush.msra.mxu0 0.0
  %32 = vmatpush.msra.mxu0 0.0
  %33 = vmatpush.msra.mxu0 0.0
  %34 = vmatpush.msra.mxu0 0.0
  %35 = vmatpush.msra.mxu0 0.0
  %36 = vmatpush.msra.mxu0 0.0
  %37 = vmatpush.msra.mxu0 0.0
  %38 = vmatpush.msra.mxu0 0.0
  %39 = vmatpush.msra.mxu0 0.0
  %40 = vmatpush.msra.mxu0 0.0
  %41 = vmatpush.msra.mxu0 0.0
  %42 = vmatpush.msra.mxu0 0.0
  %43 = vmatpush.msra.mxu0 %v25
  %44 = vmatpush.msra.mxu0 %v24
  %45 = vmatpush.msra.mxu0 %v23
  %46 = vmatpush.msra.mxu0 %v22
  %47 = vmatmul.f32.gmra.mxu0 %v29
  %v48 = vpop.f32.mrf.mxu0
  %v49 = vadd.f32 %v26, %v48
  %50 = vdwg.mxu0
  %v51 = vmax.f32 %v49, 0.0
  %v52 = vld [vmem:[%s2] sm:$0xff]
  %v53 = vld [vmem:[%s2 + $0x8] sm:$0xff]
  %v54 = vld [vmem:[%s2 + $0x10] sm:$0xff]
  %v55 = vld [vmem:[%s2 + $0x18] sm:$0xff]
  %v56 = vld [vmem:[%s2 + $0x20] sm:$0xff]
  %v57 = vld [vmem:[%s2 + $0x28] sm:$0xff]
  %v58 = vld [vmem:[%s2 + $0x30] sm:$0xff]
  %v59 = vld [vmem:[%s2 + $0x38] sm:$0xff]
  %v60 = vld [vmem:[%s2 + $0x40] sm:$0xff]
  %v61 = vld [vmem:[%s2 + $0x48] sm:$0xff]
  %v62 = vld [vmem:[%s2 + $0x50] sm:$0xff]
  %v63 = vld [vmem:[%s2 + $0x58] sm:$0xff]
  %v64 = vld [vmem:[%s2 + $0x60] sm:$0xff]
  %v65 = vld [vmem:[%s2 + $0x68] sm:$0xff]
  %v66 = vld [vmem:[%s2 + $0x70] sm:$0xff]
  %v67 = vld [vmem:[%s2 + $0x78] sm:$0xff]
  %v68 = vperm.slane %v21, 1
  %69 = vmatpush.msra.mxu0 %v67
  %70 = vmatpush.msra.mxu0 %v66
  %71 = vmatpush.msra.mxu0 %v65
  %72 = vmatpush.msra.mxu0 %v64
  %73 = vmatpush.msra.mxu0 %v63
  %74 = vmatpush.msra.mxu0 %v62
  %75 = vmatpush.msra.mxu0 %v61
  %76 = vmatpush.msra.mxu0 %v60
  %77 = vmatpush.msra.mxu0 %v59
  %78 = vmatpush.msra.mxu0 %v58
  %79 = vmatpush.msra.mxu0 %v57
  %80 = vmatpush.msra.mxu0 %v56
  %81 = vmatpush.msra.mxu0 %v55
  %82 = vmatpush.msra.mxu0 %v54
  %83 = vmatpush.msra.mxu0 %v53
  %84 = vmatpush.msra.mxu0 %v52
  %85 = vmatmul.f32.gmra.mxu0 %v51
  %v86 = vpop.f32.mrf.mxu0
  %v87 = vadd.f32 %v68, %v86
  %88 = vdwg.mxu0
  %v89 = vmax.f32 %v87, 0.0
  %v90 = vld [vmem:[%s3] sm:$0xff]
  %v91 = vld [vmem:[%s3 + $0x8] sm:$0xff]
  %v92 = vld [vmem:[%s3 + $0x10] sm:$0xff]
  %v93 = vld [vmem:[%s3 + $0x18] sm:$0xff]
  %v94 = vld [vmem:[%s3 + $0x20] sm:$0xff]
  %v95 = vld [vmem:[%s3 + $0x28] sm:$0xff]
  %v96 = vld [vmem:[%s3 + $0x30] sm:$0xff]
  %v97 = vld [vmem:[%s3 + $0x38] sm:$0xff]
  %v98 = vperm.slane %v21, 2
  %vm99 = vcmask 523264
  %v101 = vsel %vm99, %v89, 0
  %103 = vmatpush.msra.mxu0 0.0
  %104 = vmatpush.msra.mxu0 0.0
  %105 = vmatpush.msra.mxu0 0.0
  %106 = vmatpush.msra.mxu0 0.0
  %107 = vmatpush.msra.mxu0 0.0
  %108 = vmatpush.msra.mxu0 0.0
  %109 = vmatpush.msra.mxu0 0.0
  %110 = vmatpush.msra.mxu0 0.0
  %111 = vmatpush.msra.mxu0 %v97
  %112 = vmatpush.msra.mxu0 %v96
  %113 = vmatpush.msra.mxu0 %v95
  %114 = vmatpush.msra.mxu0 %v94
  %115 = vmatpush.msra.mxu0 %v93
  %116 = vmatpush.msra.mxu0 %v92
  %117 = vmatpush.msra.mxu0 %v91
  %118 = vmatpush.msra.mxu0 %v90
  %119 = vmatmul.f32.gmra.mxu0 %v101
  %v120 = vpop.f32.mrf.mxu0
  %v121 = vadd.f32 %v98, %v120
  %122 = vdwg.mxu0
  %v123 = vlaneseq
  %v124 = vshrl.u32 %v123, 7
  %v125 = vadd.s32 %v124, 8
  %v126 = vlaneseq
  %v127 = vand.u32 %v126, 127
  %vm128 = vcmp.ge.s32.totalorder %v124, 3
  %vm129 = vcmp.ge.s32.totalorder %v125, 3
  %v130 = vsel %vm128, 1, 0
  %v131 = vsel %vm129, 1, 0
  %vm132 = vcmp.ge.s32.totalorder %v127, 3
  %v133 = vsel %vm132, 1, 0
  %vm134 = vcmp.ge.s32.totalorder %v124, 6
  %vm135 = vcmp.ge.s32.totalorder %v125, 6
  %v136 = vsel %vm134, 1, 0
  %v137 = vsel %vm135, 1, 0
  %v138 = vadd.s32 %v130, %v136
  %v139 = vadd.s32 %v131, %v137
  %vm140 = vcmp.ge.s32.totalorder %v127, 6
  %v141 = vsel %vm140, 1, 0
  %v142 = vadd.s32 %v133, %v141
  %vm143 = vcmp.ge.s32.totalorder %v124, 9
  %vm144 = vcmp.ge.s32.totalorder %v125, 9
  %v145 = vsel %vm143, 1, 0
  %v146 = vsel %vm144, 1, 0
  %v147 = vadd.s32 %v138, %v145
  %v148 = vadd.s32 %v139, %v146
  %vm149 = vcmp.ge.s32.totalorder %v127, 9
  %v150 = vsel %vm149, 1, 0
  %v151 = vadd.s32 %v142, %v150
  %vm152 = vcmp.eq.s32.totalorder %v147, %v151
  %vm153 = vcmp.eq.s32.totalorder %v148, %v151
  %v155 = vrot.slane %v121, 1
  %v156 = vrot.slane %v121, 2
  %v157 = vrot.slane %v121, 3
  %v158 = vrot.slane %v121, 4
  %v159 = vrot.slane %v121, 5
  %v160 = vrot.slane %v121, 6
  %v161 = vrot.slane %v121, 7
  %v162 = vsel %vm152, 1, 0
  %v163 = vsel %vm153, 1, 0
  %vm164 = vcmp.eq.s32.totalorder %v162, 1
  %vm165 = vcmp.eq.s32.totalorder %v163, 1
  %v166 = vperm.slane %v121, 0
  %v167 = vperm.slane %v155, 0
  %v168 = vperm.slane %v156, 0
  %v169 = vperm.slane %v157, 0
  %v170 = vperm.slane %v158, 0
  %v171 = vperm.slane %v159, 0
  %v172 = vperm.slane %v160, 0
  %v173 = vperm.slane %v161, 0
  %v182 = vsel %vm164, %v166, -1e+30
  %v183 = vsel %vm165, %v166, -1e+30
  %v184 = vsel %vm164, %v167, -1e+30
  %v185 = vsel %vm165, %v167, -1e+30
  %v186 = vsel %vm164, %v168, -1e+30
  %v187 = vsel %vm165, %v168, -1e+30
  %v188 = vsel %vm164, %v169, -1e+30
  %v189 = vsel %vm165, %v169, -1e+30
  %v190 = vsel %vm164, %v170, -1e+30
  %v191 = vsel %vm165, %v170, -1e+30
  %v192 = vsel %vm164, %v171, -1e+30
  %v193 = vsel %vm165, %v171, -1e+30
  %v194 = vsel %vm164, %v172, -1e+30
  %v195 = vsel %vm165, %v172, -1e+30
  %v196 = vsel %vm164, %v173, -1e+30
  %v197 = vsel %vm165, %v173, -1e+30
  %vm198 = vcmask 97280
  %v199 = vsel %vm198, %v182, -inf
  %200 = vmax.xlane.f32.xlu0 %v199
  %v201 = vpop.xlane.xlu0 %200
  %vm202 = vcmask 93184
  %v203 = vsel %vm202, %v183, -inf
  %204 = vmax.xlane.f32.xlu0 %v203
  %v205 = vpop.xlane.xlu0 %204
  %v206 = vsel %vm198, %v184, -inf
  %207 = vmax.xlane.f32.xlu0 %v206
  %v208 = vpop.xlane.xlu0 %207
  %v209 = vsel %vm202, %v185, -inf
  %210 = vmax.xlane.f32.xlu0 %v209
  %v211 = vpop.xlane.xlu0 %210
  %v212 = vsel %vm198, %v186, -inf
  %213 = vmax.xlane.f32.xlu0 %v212
  %v214 = vpop.xlane.xlu0 %213
  %v215 = vsel %vm202, %v187, -inf
  %216 = vmax.xlane.f32.xlu0 %v215
  %v217 = vpop.xlane.xlu0 %216
  %v218 = vsel %vm198, %v188, -inf
  %219 = vmax.xlane.f32.xlu0 %v218
  %v220 = vpop.xlane.xlu0 %219
  %v221 = vsel %vm202, %v189, -inf
  %222 = vmax.xlane.f32.xlu0 %v221
  %v223 = vpop.xlane.xlu0 %222
  %v224 = vsel %vm198, %v190, -inf
  %225 = vmax.xlane.f32.xlu0 %v224
  %v226 = vpop.xlane.xlu0 %225
  %v227 = vsel %vm202, %v191, -inf
  %228 = vmax.xlane.f32.xlu0 %v227
  %v229 = vpop.xlane.xlu0 %228
  %v230 = vsel %vm198, %v192, -inf
  %231 = vmax.xlane.f32.xlu0 %v230
  %v232 = vpop.xlane.xlu0 %231
  %v233 = vsel %vm202, %v193, -inf
  %234 = vmax.xlane.f32.xlu0 %v233
  %v235 = vpop.xlane.xlu0 %234
  %v236 = vsel %vm198, %v194, -inf
  %237 = vmax.xlane.f32.xlu0 %v236
  %v238 = vpop.xlane.xlu0 %237
  %v239 = vsel %vm202, %v195, -inf
  %240 = vmax.xlane.f32.xlu0 %v239
  %v241 = vpop.xlane.xlu0 %240
  %v242 = vsel %vm198, %v196, -inf
  %243 = vmax.xlane.f32.xlu0 %v242
  %v244 = vpop.xlane.xlu0 %243
  %v245 = vsel %vm202, %v197, -inf
  %246 = vmax.xlane.f32.xlu0 %v245
  %v247 = vpop.xlane.xlu0 %246
  %v248 = vsub.f32 %v182, %v201
  %v249 = vsub.f32 %v183, %v205
  %v250 = vsub.f32 %v184, %v208
  %v251 = vsub.f32 %v185, %v211
  %v252 = vsub.f32 %v186, %v214
  %v253 = vsub.f32 %v187, %v217
  %v254 = vsub.f32 %v188, %v220
  %v255 = vsub.f32 %v189, %v223
  %v256 = vsub.f32 %v190, %v226
  %v257 = vsub.f32 %v191, %v229
  %v258 = vsub.f32 %v192, %v232
  %v259 = vsub.f32 %v193, %v235
  %v260 = vsub.f32 %v194, %v238
  %v261 = vsub.f32 %v195, %v241
  %v262 = vsub.f32 %v196, %v244
  %v263 = vsub.f32 %v197, %v247
  %v264 = vmul.f32 %v248, 1.442695
  %v265 = vpow.pop %v264
  %v266 = vmul.f32 %v249, 1.442695
  %v267 = vpow.pop %v266
  %v268 = vmul.f32 %v250, 1.442695
  %v269 = vpow.pop %v268
  %v270 = vmul.f32 %v251, 1.442695
  %v271 = vpow.pop %v270
  %v272 = vmul.f32 %v252, 1.442695
  %v273 = vpow.pop %v272
  %v274 = vmul.f32 %v253, 1.442695
  %v275 = vpow.pop %v274
  %v276 = vmul.f32 %v254, 1.442695
  %v277 = vpow.pop %v276
  %v278 = vmul.f32 %v255, 1.442695
  %v279 = vpow.pop %v278
  %v280 = vmul.f32 %v256, 1.442695
  %v281 = vpow.pop %v280
  %v282 = vmul.f32 %v257, 1.442695
  %v283 = vpow.pop %v282
  %v284 = vmul.f32 %v258, 1.442695
  %v285 = vpow.pop %v284
  %v286 = vmul.f32 %v259, 1.442695
  %v287 = vpow.pop %v286
  %v288 = vmul.f32 %v260, 1.442695
  %v289 = vpow.pop %v288
  %v290 = vmul.f32 %v261, 1.442695
  %v291 = vpow.pop %v290
  %v292 = vmul.f32 %v262, 1.442695
  %v293 = vpow.pop %v292
  %v294 = vmul.f32 %v263, 1.442695
  %v295 = vpow.pop %v294
  %v296 = vsel %vm198, %v265, 0.0
  %297 = vadd.xlane.f32.xlu0 %v296
  %v298 = vpop.xlane.xlu0 %297
  %v299 = vsel %vm202, %v267, 0.0
  %300 = vadd.xlane.f32.xlu0 %v299
  %v301 = vpop.xlane.xlu0 %300
  %v302 = vsel %vm198, %v269, 0.0
  %303 = vadd.xlane.f32.xlu0 %v302
  %v304 = vpop.xlane.xlu0 %303
  %v305 = vsel %vm202, %v271, 0.0
  %306 = vadd.xlane.f32.xlu0 %v305
  %v307 = vpop.xlane.xlu0 %306
  %v308 = vsel %vm198, %v273, 0.0
  %309 = vadd.xlane.f32.xlu0 %v308
  %v310 = vpop.xlane.xlu0 %309
  %v311 = vsel %vm202, %v275, 0.0
  %312 = vadd.xlane.f32.xlu0 %v311
  %v313 = vpop.xlane.xlu0 %312
  %v314 = vsel %vm198, %v277, 0.0
  %315 = vadd.xlane.f32.xlu0 %v314
  %v316 = vpop.xlane.xlu0 %315
  %v317 = vsel %vm202, %v279, 0.0
  %318 = vadd.xlane.f32.xlu0 %v317
  %v319 = vpop.xlane.xlu0 %318
  %v320 = vsel %vm198, %v281, 0.0
  %321 = vadd.xlane.f32.xlu0 %v320
  %v322 = vpop.xlane.xlu0 %321
  %v323 = vsel %vm202, %v283, 0.0
  %324 = vadd.xlane.f32.xlu0 %v323
  %v325 = vpop.xlane.xlu0 %324
  %v326 = vsel %vm198, %v285, 0.0
  %327 = vadd.xlane.f32.xlu0 %v326
  %v328 = vpop.xlane.xlu0 %327
  %v329 = vsel %vm202, %v287, 0.0
  %330 = vadd.xlane.f32.xlu0 %v329
  %v331 = vpop.xlane.xlu0 %330
  %v332 = vsel %vm198, %v289, 0.0
  %333 = vadd.xlane.f32.xlu0 %v332
  %v334 = vpop.xlane.xlu0 %333
  %v335 = vsel %vm202, %v291, 0.0
  %336 = vadd.xlane.f32.xlu0 %v335
  %v337 = vpop.xlane.xlu0 %336
  %v338 = vsel %vm198, %v293, 0.0
  %339 = vadd.xlane.f32.xlu0 %v338
  %v340 = vpop.xlane.xlu0 %339
  %v341 = vsel %vm202, %v295, 0.0
  %342 = vadd.xlane.f32.xlu0 %v341
  %v343 = vpop.xlane.xlu0 %342
  %v360 = vperm.slane %v201, %v127
  %v361 = vadd.s32 %v127, 4294967288
  %v362 = vperm.slane %v205, %v361
  %vm363 = vcmask 130112
  %v364 = vsel %vm363, %v362, %v360
  %v365 = vperm.slane %v208, %v127
  %v366 = vperm.slane %v211, %v361
  %v367 = vsel %vm363, %v366, %v365
  %v368 = vperm.slane %v214, %v127
  %v369 = vperm.slane %v217, %v361
  %v370 = vsel %vm363, %v369, %v368
  %v371 = vperm.slane %v220, %v127
  %v372 = vperm.slane %v223, %v361
  %v373 = vsel %vm363, %v372, %v371
  %v374 = vperm.slane %v226, %v127
  %v375 = vperm.slane %v229, %v361
  %v376 = vsel %vm363, %v375, %v374
  %v377 = vperm.slane %v232, %v127
  %v378 = vperm.slane %v235, %v361
  %v379 = vsel %vm363, %v378, %v377
  %v380 = vperm.slane %v238, %v127
  %v381 = vperm.slane %v241, %v361
  %v382 = vsel %vm363, %v381, %v380
  %v383 = vperm.slane %v244, %v127
  %v384 = vperm.slane %v247, %v361
  %v385 = vsel %vm363, %v384, %v383
  %vm386 = vcmask 1041409
  %v387 = vsel %vm386, %v367, %v364
  %vm388 = vcmask 1042434
  %v389 = vsel %vm388, %v370, %v387
  %vm390 = vcmask 1043459
  %v391 = vsel %vm390, %v373, %v389
  %vm392 = vcmask 1044484
  %v393 = vsel %vm392, %v376, %v391
  %vm394 = vcmask 1045509
  %v395 = vsel %vm394, %v379, %v393
  %vm396 = vcmask 1046534
  %v397 = vsel %vm396, %v382, %v395
  %vm398 = vcmask 1047559
  %v399 = vsel %vm398, %v385, %v397
  %v401 = vsub.f32 %v121, %v399
  %v402 = vmul.f32 %v401, 1.442695
  %v403 = vpow.pop %v402
  %v420 = vperm.slane %v298, %v127
  %v421 = vperm.slane %v301, %v361
  %v422 = vsel %vm363, %v421, %v420
  %v423 = vperm.slane %v304, %v127
  %v424 = vperm.slane %v307, %v361
  %v425 = vsel %vm363, %v424, %v423
  %v426 = vperm.slane %v310, %v127
  %v427 = vperm.slane %v313, %v361
  %v428 = vsel %vm363, %v427, %v426
  %v429 = vperm.slane %v316, %v127
  %v430 = vperm.slane %v319, %v361
  %v431 = vsel %vm363, %v430, %v429
  %v432 = vperm.slane %v322, %v127
  %v433 = vperm.slane %v325, %v361
  %v434 = vsel %vm363, %v433, %v432
  %v435 = vperm.slane %v328, %v127
  %v436 = vperm.slane %v331, %v361
  %v437 = vsel %vm363, %v436, %v435
  %v438 = vperm.slane %v334, %v127
  %v439 = vperm.slane %v337, %v361
  %v440 = vsel %vm363, %v439, %v438
  %v441 = vperm.slane %v340, %v127
  %v442 = vperm.slane %v343, %v361
  %v443 = vsel %vm363, %v442, %v441
  %v444 = vsel %vm386, %v425, %v422
  %v445 = vsel %vm388, %v428, %v444
  %v446 = vsel %vm390, %v431, %v445
  %v447 = vsel %vm392, %v434, %v446
  %v448 = vsel %vm394, %v437, %v447
  %v449 = vsel %vm396, %v440, %v448
  %v450 = vsel %vm398, %v443, %v449
  %v452 = vrcp.pop %v450
  %v453 = vmul.f32 %v450, %v452
  %v454 = vsub.f32 1.0, %v453
  %v455 = vmul.f32 %v452, %v454
  %v456 = vadd.f32 %v452, %v455
  %vm457 = vweird.f32 %v450
  %vm458 = vweird.f32 %v452
  %vm459 = vmor %vm457, %vm458
  %v460 = vsel %vm459, %v452, %v456
  %v461 = vand.u32 2147483647, %v450
  %vm462 = vcmp.eq.f32.partialorder %v461, 8.507059e+37
  %v463 = vand.u32 %v450, 2147483648
  %v464 = vor.u32 1.1754944e-38, %v463
  %v465 = vsel %vm462, %v464, %v460
  %v466 = vmul.f32 %v403, %v465
  %468 = vrot.lane.b32.xlu0 %v466, 12
  %v469 = vpop.permute.xlu0 %468
  %v471 = vsel %vm198, %v121, %v469
  %vm472 = vcmask 195584
  %473 = vst.msk [vmem:[%s5] sm:$0xff] %vm472, %v471
  // Predicated region
  $region22: #{direction_head_forward_packed.1} parent=0 // pred_check
    _
  $region23: #{direction_head_forward_packed.1} parent=0 // pred_check_branch
    %475 = sbr.rel (0) target = $region25
  $region24: #{direction_head_forward_packed.1} parent=0 // pred_region
    _
  $region25: #{direction_head_forward_packed.1} parent=0 // pred_fallthru
    _
  // Predicated region
  $region26: #{direction_head_forward_packed.1} parent=0 // pred_check
    _
  $region27: #{direction_head_forward_packed.1} parent=0 // pred_check_branch
    %477 = sbr.rel (0) target = $region29
  $region28: #{direction_head_forward_packed.1} parent=0 // pred_region
    _
  $region29: #{direction_head_forward_packed.1} parent=0 // pred_fallthru
    _

</llo_original>
